<compile_context>
chip_gen: v7x
topology: tpu7x:2x2x1
jax: 0.10.0
libtpu: 0.0.40
codegen_flags: <defaults>
</compile_context>

<pallas_src>
import functools

import jax
import jax.numpy as jnp
from jax import lax
from jax.experimental import pallas as pl
from jax.experimental.pallas import tpu as pltpu

_LANE = 128


def _label_smooth_ce_kernel(pred_ref, label_ref, out_ref, *, smoothing, n_valid):
    """One batch tile -> scalar partial sum broadcast into a lane-dense block.

    pred_ref:  (TILE_N, C)   logits (native dtype: f32 or bf16)
    label_ref: (TILE_N, 1)   int32 class indices
    out_ref:   (1, 8, 128)   f32 partial sum (value replicated across the block)
    """
    i = pl.program_id(0)
    tile_n, num_classes = pred_ref.shape

    pred_in = pred_ref[...]                        # native dtype, straight off DMA
    label = label_ref[...]                         # (TILE_N, 1) int32

    # Row max on the native dtype (max is exact in bf16; saves a full f32 pass
    # on v6e/v7x), then a single fused upcast+subtract for z.
    m = jnp.max(pred_in, axis=1, keepdims=True).astype(jnp.float32)   # (TILE_N, 1)
    z = pred_in.astype(jnp.float32) - m                               # (TILE_N, C)

    # Numerically stable log-sum-exp over classes (keep f32 exp/accumulate as
    # the default; a bf16-EUP exp variant would trade ~1e-3 rel error for speed).
    lse = jnp.log(jnp.sum(jnp.exp(z), axis=1, keepdims=True))         # (TILE_N, 1)

    # Fused smoothed-target reduction:
    #   w_c = s/C + (1-s)*[c == label];   per_sample = lse - sum_c(w_c * z_c)
    # (valid because sum_c(w_c) == 1).  The (1, C) iota broadcasts against the
    # (TILE_N, 1) labels -- no full (TILE_N, C) int32 index tile is ever
    # materialized -- and one weighted reduction replaces the separate
    # z[label] / sum(z) passes.
    lane_ids = lax.broadcasted_iota(jnp.int32, (1, num_classes), 1)
    off = smoothing / num_classes
    w = jnp.where(lane_ids == label, 1.0 - smoothing + off, off)      # (TILE_N, C) f32
    per_sample = lse - jnp.sum(w * z, axis=1, keepdims=True)          # (TILE_N, 1)

    # Mask rows past the true batch size (last, possibly partial, tile).
    # NOTE: this mask must stay BEFORE the tile reduction below.
    row_ids = i * tile_n + lax.broadcasted_iota(jnp.int32, (tile_n, 1), 0)
    per_sample = jnp.where(row_ids < n_valid, per_sample, 0.0)

    partial = jnp.sum(per_sample)                  # scalar partial for this tile
    out_ref[...] = jnp.broadcast_to(partial, out_ref.shape).astype(out_ref.dtype)


def _vmem_budget_bytes():
    """Working-set budget for one grid step (inputs x2 buffers + f32 temps)."""
    try:
        cap = int(pltpu.get_tpu_info().vmem_capacity_bytes)
    except Exception:
        cap = 64 * 1024 * 1024          # v7x per-TC physical VMEM (most constrained)
    # ~1/4 of physical VMEM keeps inside every generation's scoped limit (v5e's
    # 16 MiB default is raised explicitly via vmem_limit_bytes) and leaves room
    # for the second TensorCore's working set on v7x.
    return min(16 * 1024 * 1024, cap // 4)


def _choose_tile_n(n, c, in_itemsize, budget_bytes):
    # Per-row VMEM cost of one grid step:
    #   2 double-buffered logits rows   : 2 * C * itemsize
    #   2 double-buffered label rows    : 2 * 128 * 4   ((TILE_N,1) i32 pads to 128 lanes)
    #   ~3 full-width f32 temporaries   : 3 * C * 4     (z, exp(z), w*z)
    per_row = 2 * c * in_itemsize + 2 * _LANE * 4 + 3 * c * 4
    t = budget_bytes // max(1, per_row)
    t = max(16, min(1024, (t // 16) * 16))   # multiple of 16 for bf16 sublane packing
    if n <= t:
        return n                              # full-batch block is always legal
    return t


def label_smooth_ce_loss(pred, label, smoothing=0.1, tile_n=None):
    n, c = pred.shape
    budget = _vmem_budget_bytes()
    if tile_n is None:
        tile_n = _choose_tile_n(n, c, pred.dtype.itemsize, budget)
    num_tiles = pl.cdiv(n, tile_n)

    label2d = label.astype(jnp.int32).reshape(n, 1)

    kernel = functools.partial(
        _label_smooth_ce_kernel, smoothing=float(smoothing), n_valid=n)

    bytes_accessed = (n * c * pred.dtype.itemsize      # logits read once
                      + n * 4                          # labels read once
                      + num_tiles * 8 * _LANE * 4)     # tiny partial-sum writeback
    cost = pl.CostEstimate(flops=5 * n * c,
                           transcendentals=n * c + n,
                           bytes_accessed=int(bytes_accessed))

    # TODO(synk): for vocab-scale C (>= ~32K) add a trailing "arbitrary" grid
    # axis over C with an online-logsumexp accumulator (running max / exp-sum /
    # weighted-sum in VMEM scratch); unnecessary at classification-scale C.
    partials = pl.pallas_call(
        kernel,
        out_shape=jax.ShapeDtypeStruct((num_tiles, 8, _LANE), jnp.float32),
        grid_spec=pltpu.PrefetchScalarGridSpec(
            num_scalar_prefetch=0,
            grid=(num_tiles,),
            in_specs=[
                # Default 2-deep pipelining: compute covers the DMA for bf16 and
                # the f32 path is purely HBM-bound, so a 3rd buffer would only
                # add VMEM pressure (worst on v7x's 64 MiB).
                pl.BlockSpec((tile_n, c), lambda i: (i, 0)),   # logits (native dtype)
                pl.BlockSpec((tile_n, 1), lambda i: (i, 0)),   # labels
            ],
            out_specs=pl.BlockSpec((1, 8, _LANE), lambda i: (i, 0, 0)),
        ),
        compiler_params=pltpu.CompilerParams(
            # Batch tiles are independent -> megacore sharding on multi-TC parts.
            dimension_semantics=("parallel",),
            # Explicit scoped-VMEM limit: raises v5e's 16 MiB default, matches
            # v6e/v7x defaults, and stays within v7x's 64 MiB physical VMEM.
            # The tile-size budget above targets roughly half of this.
            vmem_limit_bytes=int(min(32 * 1024 * 1024, budget * 2)),
        ),
        cost_estimate=cost,
    )(pred, label2d)

    # Tiny finalize in plain JAX: sum per-tile partials, single divide by true N.
    return jnp.sum(partials[:, 0, 0]) / n


def _reference(pred, label, smoothing=0.1):
    # Pure-JAX mirror of the PyTorch forward.
    p = jax.nn.softmax(pred.astype(jnp.float32), axis=1)
    c = pred.shape[1]
    one_hot = jax.nn.one_hot(label, c, dtype=jnp.float32)
    smoothed = (1.0 - smoothing) * one_hot + smoothing / c
    loss = -jnp.log(p) * smoothed
    return jnp.mean(jnp.sum(loss, axis=1))


if __name__ == "__main__":
    key = jax.random.PRNGKey(0)
    k1, k2, k3, k4 = jax.random.split(key, 4)

    # Case 1: small C, 3-tile grid with a masked remainder tile (40 % 16 == 8).
    N, C = 40, 32
    pred = jax.random.normal(k1, (N, C), dtype=jnp.float32)
    label = jax.random.randint(k2, (N,), 0, C, dtype=jnp.int32)
    out = jax.block_until_ready(label_smooth_ce_loss(pred, label, tile_n=16))
    ref = _reference(pred, label)
    assert jnp.allclose(out, ref, atol=1e-5, rtol=1e-5), (out, ref)

    # Case 2: bf16 logits path (half the HBM read, f32 math inside the kernel).
    pred_bf16 = pred.astype(jnp.bfloat16)
    out_bf16 = jax.block_until_ready(label_smooth_ce_loss(pred_bf16, label, tile_n=16))
    ref_bf16 = _reference(pred_bf16.astype(jnp.float32), label)
    assert jnp.allclose(out_bf16, ref_bf16, atol=1e-4, rtol=1e-4), (out_bf16, ref_bf16)

    # Case 3: C not a multiple of 128 (exercises lane-padding masking of the
    # cross-lane reductions) and the automatic, VMEM-budgeted tile choice.
    N2, C2 = 24, 1000
    pred2 = jax.random.normal(k3, (N2, C2), dtype=jnp.float32)
    label2 = jax.random.randint(k4, (N2,), 0, C2, dtype=jnp.int32)
    out2 = jax.block_until_ready(label_smooth_ce_loss(pred2, label2))
    ref2 = _reference(pred2, label2)
    assert jnp.allclose(out2, ref2, atol=1e-4, rtol=1e-5), (out2, ref2)

    print("KERNEL_OK")
</pallas_src>

<mosaic_0001>
module attributes {stable_mosaic.version = 11 : i64} {
  func.func @_label_smooth_ce_kernel(%arg0: i32, %arg1: memref<16x32xf32, #tpu.memory_space<vmem>>, %arg2: memref<16x1xi32, #tpu.memory_space<vmem>>, %arg3: memref<1x8x128xf32, #tpu.memory_space<vmem>>) attributes {dimension_semantics = [#tpu.dimension_semantics<parallel>], iteration_bounds = array<i64: 3>, scalar_prefetch = 0 : i64, scratch_operands = 0 : i64, tpu.core_type = #tpu.core_type<tc>, window_params = [{transform_indices = @transform_0, window_bounds = array<i64: 16, 32>}, {transform_indices = @transform_1, window_bounds = array<i64: 16, 1>}, {transform_indices = @transform_2, window_bounds = array<i64: 1, 8, 128>}]} {
    %c0 = arith.constant 0 : index
    %c0_0 = arith.constant 0 : index
    %0 = vector.load %arg1[%c0, %c0_0] : memref<16x32xf32, #tpu.memory_space<vmem>>, vector<16x32xf32>
    %c0_1 = arith.constant 0 : index
    %c0_2 = arith.constant 0 : index
    %1 = vector.load %arg2[%c0_1, %c0_2] : memref<16x1xi32, #tpu.memory_space<vmem>>, vector<16x1xi32>
    %cst = arith.constant dense<0xFF800000> : vector<16xf32>
    %2 = vector.multi_reduction <maximumf>, %0, %cst [1] : vector<16x32xf32> to vector<16xf32>
    %3 = vector.shape_cast %2 : vector<16xf32> to vector<16x1xf32>
    %4 = vector.broadcast %3 : vector<16x1xf32> to vector<16x32xf32>
    %5 = arith.subf %0, %4 : vector<16x32xf32>
    %6 = math.exp %5 : vector<16x32xf32>
    %cst_3 = arith.constant dense<0.000000e+00> : vector<16xf32>
    %7 = vector.multi_reduction <add>, %6, %cst_3 [1] : vector<16x32xf32> to vector<16xf32>
    %8 = vector.shape_cast %7 : vector<16xf32> to vector<16x1xf32>
    %9 = math.log %8 : vector<16x1xf32>
    %10 = tpu.iota {dimensions = array<i32: 1>} : vector<1x32xi32>
    %11 = vector.broadcast %10 : vector<1x32xi32> to vector<16x32xi32>
    %12 = vector.broadcast %1 : vector<16x1xi32> to vector<16x32xi32>
    %13 = arith.cmpi eq, %11, %12 : vector<16x32xi32>
    %cst_4 = arith.constant 0.903124988 : f32
    %cst_5 = arith.constant 3.125000e-03 : f32
    %14 = vector.broadcast %cst_4 : f32 to vector<16x32xf32>
    %15 = vector.broadcast %cst_5 : f32 to vector<16x32xf32>
    %16 = arith.select %13, %14, %15 : vector<16x32xi1>, vector<16x32xf32>
    %17 = arith.mulf %16, %5 : vector<16x32xf32>
    %cst_6 = arith.constant dense<0.000000e+00> : vector<16xf32>
    %18 = vector.multi_reduction <add>, %17, %cst_6 [1] : vector<16x32xf32> to vector<16xf32>
    %19 = vector.shape_cast %18 : vector<16xf32> to vector<16x1xf32>
    %20 = arith.subf %9, %19 : vector<16x1xf32>
    %c16_i32 = arith.constant 16 : i32
    %21 = arith.muli %arg0, %c16_i32 : i32
    %22 = tpu.iota {dimensions = array<i32: 0>} : vector<16x1xi32>
    %23 = vector.broadcast %21 : i32 to vector<16x1xi32>
    %24 = arith.addi %23, %22 : vector<16x1xi32>
    %c40_i32 = arith.constant 40 : i32
    %25 = vector.broadcast %c40_i32 : i32 to vector<16x1xi32>
    %26 = arith.cmpi slt, %24, %25 : vector<16x1xi32>
    %cst_7 = arith.constant 0.000000e+00 : f32
    %27 = vector.broadcast %cst_7 : f32 to vector<16x1xf32>
    %28 = arith.select %26, %20, %27 : vector<16x1xi1>, vector<16x1xf32>
    %29 = vector.shape_cast %28 : vector<16x1xf32> to vector<1x16x1xf32>
    %cst_8 = arith.constant dense<0.000000e+00> : vector<1xf32>
    %30 = vector.multi_reduction <add>, %29, %cst_8 [1, 2] : vector<1x16x1xf32> to vector<1xf32>
    %31 = vector.shape_cast %30 : vector<1xf32> to vector<1x1x1xf32>
    %32 = vector.extract %31[0, 0, 0] : f32 from vector<1x1x1xf32>
    %33 = vector.broadcast %32 : f32 to vector<1x8x128xf32>
    %c0_9 = arith.constant 0 : index
    %c0_10 = arith.constant 0 : index
    %c0_11 = arith.constant 0 : index
    %34 = vector.load %arg3[%c0_9, %c0_10, %c0_11] : memref<1x8x128xf32, #tpu.memory_space<vmem>>, vector<1x8x128xf32>
    tpu.vector_store %arg3[%c0_9, %c0_10, %c0_11], %33 {strides = array<i32>} : memref<1x8x128xf32, #tpu.memory_space<vmem>>, vector<1x8x128xf32>,
    return
  }
  func.func @transform_0(%arg0: i32) -> (i32, i32) {
    %c0_i32 = arith.constant 0 : i32
    %c0_i32_0 = arith.constant 0 : i32
    return %arg0, %c0_i32 : i32, i32
  }
  func.func @transform_1(%arg0: i32) -> (i32, i32) {
    %c0_i32 = arith.constant 0 : i32
    %c0_i32_0 = arith.constant 0 : i32
    return %arg0, %c0_i32 : i32, i32
  }
  func.func @transform_2(%arg0: i32) -> (i32, i32, i32) {
    %c0_i32 = arith.constant 0 : i32
    %c0_i32_0 = arith.constant 0 : i32
    %c0_i32_1 = arith.constant 0 : i32
    return %arg0, %c0_i32, %c0_i32_0 : i32, i32, i32
  }
}

</mosaic_0001>

<llo_original>
// kernel: tpu_custom_call.1
$region0: #{tpu_custom_call.1}
  #allocation0 [shape = 'u32[]', space=smem, size = 0x4, offset = 0x4, fixed_abs, tag = 'smem constant byte address 0x4 - core index']
  #allocation1 [shape = 'u32[144,128]{1,0:T(1,128)}', space=vmem, size = 0x12000, scoped, tag = 'internal scratch']
  %s0 = inlined_call_operand.vmem [shape: f32[40,32], index: 0, kind: input, shape index: {}]
  %s1 = inlined_call_operand.vmem [shape: s32[40,1], index: 1, kind: input, shape index: {}]
  %s2 = inlined_call_operand.hbm [shape: f32[3,8,128], index: 2, kind: output, shape index: {}]
  %s3 = sld [smem:[#allocation0]]
  $region41: #{tpu_custom_call.1} parent=0
    _
  %s5 = ssub.s32 1, %s3
  %s6 = scalar_select 0, %s5, %s3
  $region1: #{tpu_custom_call.1} parent=0
    #allocation2 [shape = 'u8[8192]{0}', space=vmem, size = 0x2000, scoped, tag = 'output window, operand 0']
    #allocation3 [shape = 's32[2]{0}', space=sflag, size = 0x8, scoped, tag = 'scoped memory for tpu_custom_call.1']
    %7 = vsyncpa [#allocation3], 0
    %s8 = scalar_lea.sflag [#allocation3], 1
    %9 = vsyncpa %s8, 0
    loop: start=0, step=1, limit=5
    $region2: #{tpu_custom_call.1} parent=1 // loop_pre_header
      _
    $region3: #{tpu_custom_call.1} parent=1 // loop_header
      %s11 = sphi 0, %s15
      %p12 = scmp.ge.s32.totalorder %s11, 5
      %s21 = sphi 0, %s23
      %s24 = sphi 0, %s21
      %s25 = sphi 0, %s24
      %s41 = sphi 0, %s25
      %s47 = sphi 0, %s49
      %s50 = sphi 0, %s47
      %s51 = sphi 0, %s50
      %s67 = sphi 0, %s51
      %s73 = sphi 0, %s75
      %s76 = sphi 0, %s73
      %s77 = sphi 0, %s76
      %s93 = sphi 0, %s77
    $region4: #{tpu_custom_call.1} parent=1 // loop_header_branch
      %14 = sbr.rel (%p12) target = $region8
    $region5: #{tpu_custom_call.1} parent=1 // loop_body
      %s16 = ssub.s32 %s11, 1
      %s17 = ssub.s32 %s11, 2
      %s18 = sadd.s32 %s11, 1
      %s19 = ssub.s32 %s11, %s18
      %p20 = scmp.eq.s32.totalorder %s19, 0
      %s22 = sadd.s32 %s21, 1
      %s23 = scalar_select %p20, %s21, %s22
      %p26 = pneg %p20
      %p27 = scmp.eq.s32.totalorder %s11, 2
      %p28 = por %p26, %p27
      %p29 = scmp.ne.s32.totalorder %s21, %s24
      %p30 = scmp.eq.s32.totalorder %s11, 0
      %p31 = por %p29, %p30
      %p32 = scmp.ne.s32.totalorder %s21, %s24
      %p33 = scmp.eq.s32.totalorder %s16, 2
      %p34 = por %p32, %p33
      %p35 = scmp.ne.s32.totalorder %s24, %s25
      %p36 = scmp.eq.s32.totalorder %s16, 0
      %p37 = por %p35, %p36
      %p38 = scmp.ne.s32.totalorder %s24, %s25
      %p39 = scmp.eq.s32.totalorder %s17, 2
      %p40 = por %p38, %p39
      %p42 = scmp.ne.s32.totalorder %s25, %s41
      %p43 = scmp.eq.s32.totalorder %s17, 0
      %p44 = por %p42, %p43
      %s45 = ssub.s32 %s11, %s18
      %p46 = scmp.eq.s32.totalorder %s45, 0
      %s48 = sadd.s32 %s47, 1
      %s49 = scalar_select %p46, %s47, %s48
      %p52 = pneg %p46
      %p53 = scmp.eq.s32.totalorder %s11, 2
      %p54 = por %p52, %p53
      %p55 = scmp.ne.s32.totalorder %s47, %s50
      %p56 = scmp.eq.s32.totalorder %s11, 0
      %p57 = por %p55, %p56
      %p58 = scmp.ne.s32.totalorder %s47, %s50
      %p59 = scmp.eq.s32.totalorder %s16, 2
      %p60 = por %p58, %p59
      %p61 = scmp.ne.s32.totalorder %s50, %s51
      %p62 = scmp.eq.s32.totalorder %s16, 0
      %p63 = por %p61, %p62
      %p64 = scmp.ne.s32.totalorder %s50, %s51
      %p65 = scmp.eq.s32.totalorder %s17, 2
      %p66 = por %p64, %p65
      %p68 = scmp.ne.s32.totalorder %s51, %s67
      %p69 = scmp.eq.s32.totalorder %s17, 0
      %p70 = por %p68, %p69
      %s71 = ssub.s32 %s11, %s18
      %p72 = scmp.eq.s32.totalorder %s71, 0
      %s74 = sadd.s32 %s73, 1
      %s75 = scalar_select %p72, %s73, %s74
      %p78 = pneg %p72
      %p79 = scmp.eq.s32.totalorder %s11, 2
      %p80 = por %p78, %p79
      %p81 = scmp.ne.s32.totalorder %s73, %s76
      %p82 = scmp.eq.s32.totalorder %s11, 0
      %p83 = por %p81, %p82
      %p84 = scmp.ne.s32.totalorder %s73, %s76
      %p85 = scmp.eq.s32.totalorder %s16, 2
      %p86 = por %p84, %p85
      %p87 = scmp.ne.s32.totalorder %s76, %s77
      %p88 = scmp.eq.s32.totalorder %s16, 0
      %p89 = por %p87, %p88
      %p90 = scmp.ne.s32.totalorder %s76, %s77
      %p91 = scmp.eq.s32.totalorder %s17, 2
      %p92 = por %p90, %p91
      %p94 = scmp.ne.s32.totalorder %s77, %s93
      %p95 = scmp.eq.s32.totalorder %s17, 0
      %p96 = por %p94, %p95
      %p97 = scmp.le.s32.totalorder 1, %s11
      %p98 = scmp.lt.s32.totalorder %s11, 4
      %p99 = pnand %p97, %p98
      %p100 = pneg %p99
      // Predicated region
      $region9: #{tpu_custom_call.1} parent=5 // pred_check
        _
      $region10: #{tpu_custom_call.1} parent=5 // pred_check_branch
        %102 = sbr.rel (%p99) target = $region12
      $region11: #{tpu_custom_call.1} parent=5 // pred_region
        %s103 = ssub.s32 %s11, 1
      $region12: #{tpu_custom_call.1} parent=5 // pred_fallthru
        _
      %p104 = scmp.lt.s32.totalorder %s11, 3
      // Predicated region
      $region13: #{tpu_custom_call.1} parent=5 // pred_check
        %p105 = pneg %p104
      $region14: #{tpu_custom_call.1} parent=5 // pred_check_branch
        %107 = sbr.rel (%p105) target = $region16
      $region15: #{tpu_custom_call.1} parent=5 // pred_region
        // Predicated region
        $region17: #{tpu_custom_call.1} parent=15 // pred_check
          %p108 = pneg %p31
        $region18: #{tpu_custom_call.1} parent=15 // pred_check_branch
          %110 = sbr.rel (%p108) target = $region20
        $region19: #{tpu_custom_call.1} parent=15 // pred_region
          %s111 = smul.u32 2, %s11
          %s112 = ssub.s32 5, %s111
          %p113 = scmp.lt.s32.totalorder %s112, 2
          %s114 = scalar_select %p113, %s112, 2
          %s115 = smul.u32 128, %s114
          %p116 = scmp.lt.s32.totalorder %s111, 4
          %s117 = scalar_select %p116, %s111, 4
          %s118 = smul.addr %s117, 8
          %s119 = scalar_lea.vmem %s0, %s118
          %s120 = smul.u32 2, %s11
          %s121 = ssub.s32 5, %s120
          %p122 = scmp.lt.s32.totalorder %s121, 2
          %s123 = scalar_select %p122, %s121, 2
          %s124 = smul.u32 128, %s123
        $region20: #{tpu_custom_call.1} parent=15 // pred_fallthru
          _
        // Predicated region
        $region21: #{tpu_custom_call.1} parent=15 // pred_check
          %p125 = pneg %p57
        $region22: #{tpu_custom_call.1} parent=15 // pred_check_branch
          %127 = sbr.rel (%p125) target = $region24
        $region23: #{tpu_custom_call.1} parent=15 // pred_region
          %s128 = smul.u32 2, %s11
          %s129 = ssub.s32 5, %s128
          %p130 = scmp.lt.s32.totalorder %s129, 2
          %s131 = scalar_select %p130, %s129, 2
          %s132 = smul.u32 128, %s131
          %p133 = scmp.lt.s32.totalorder %s128, 4
          %s134 = scalar_select %p133, %s128, 4
          %s135 = smul.addr %s134, 8
          %s136 = scalar_lea.vmem %s1, %s135
          %s137 = smul.u32 2, %s11
          %s138 = ssub.s32 5, %s137
          %p139 = scmp.lt.s32.totalorder %s138, 2
          %s140 = scalar_select %p139, %s138, 2
          %s141 = smul.u32 128, %s140
        $region24: #{tpu_custom_call.1} parent=15 // pred_fallthru
          _
      $region16: #{tpu_custom_call.1} parent=5 // pred_fallthru
        _
      %p142 = scmp.le.s32.totalorder 1, %s11
      %p143 = scmp.lt.s32.totalorder %s11, 4
      %p144 = pnand %p142, %p143
      %p145 = pneg %p144
      // Predicated region
      $region25: #{tpu_custom_call.1} parent=5 // pred_check
        _
      $region26: #{tpu_custom_call.1} parent=5 // pred_check_branch
        %147 = sbr.rel (%p144) target = $region28
      $region27: #{tpu_custom_call.1} parent=5 // pred_region
        %s148 = ssub.s32 %s11, 1
        %s149 = smul.u32 2, %s16
        %s150 = ssub.s32 5, %s149
        %p151 = scmp.lt.s32.totalorder %s150, 2
        %s152 = scalar_select %p151, %s150, 2
        %s153 = smul.u32 128, %s152
        %p154 = scmp.lt.s32.totalorder %s149, 4
        %s155 = scalar_select %p154, %s149, 4
        %s156 = smul.addr %s155, 8
        %s157 = scalar_lea.vmem %s0, %s156
        %p158 = pneg %p37
        %p159 = pneg %p34
        %s160 = smul.u32 2, %s16
        %s161 = ssub.s32 5, %s160
        %p162 = scmp.lt.s32.totalorder %s161, 2
        %s163 = scalar_select %p162, %s161, 2
        %s164 = smul.u32 128, %s163
        %p165 = scmp.lt.s32.totalorder %s160, 4
        %s166 = scalar_select %p165, %s160, 4
        %s167 = smul.addr %s166, 8
        %s168 = scalar_lea.vmem %s1, %s167
        %p169 = pneg %p63
        %p170 = pneg %p60
        %p171 = pneg %p89
        %p172 = pneg %p86
        %s173 = sand.u32 %s76, 1
        %s174 = scalar_lea.sflag [#allocation3], %s173
        %s175 = sand.u32 %s76, 1
        %s176 = smul.addr %s175, 8
        %s177 = scalar_lea.vmem [#allocation2], %s176
        %s178 = smul.u32 2, %s16
        %s179 = ssub.s32 5, %s178
        %p180 = scmp.lt.s32.totalorder %s179, 2
        %s181 = scalar_select %p180, %s179, 2
        %s182 = smul.u32 128, %s181
        %p183 = scmp.lt.s32.totalorder %s178, 4
        %s184 = scalar_select %p183, %s178, 4
        %s185 = smul.addr %s184, 8
        %s186 = scalar_lea.vmem %s0, %s185
        %s187 = smul.u32 2, %s16
        %s188 = ssub.s32 5, %s187
        %p189 = scmp.lt.s32.totalorder %s188, 2
        %s190 = scalar_select %p189, %s188, 2
        %s191 = smul.u32 128, %s190
        %s192 = smul.u32 2, %s16
        %s193 = ssub.s32 5, %s192
        %p194 = scmp.lt.s32.totalorder %s193, 2
        %s195 = scalar_select %p194, %s193, 2
        %s196 = smul.u32 128, %s195
        %p197 = scmp.lt.s32.totalorder %s192, 4
        %s198 = scalar_select %p197, %s192, 4
        %s199 = smul.addr %s198, 8
        %s200 = scalar_lea.vmem %s1, %s199
        %s201 = smul.u32 2, %s16
        %s202 = ssub.s32 5, %s201
        %p203 = scmp.lt.s32.totalorder %s202, 2
        %s204 = scalar_select %p203, %s202, 2
        %s205 = smul.u32 128, %s204
        %v206 = vld [vmem:[%s186] sm:$0xff]
        %v207 = vld [vmem:[%s186 + $0x8] sm:$0xff]
        %v208 = vld [vmem:[%s200] sm:$0xff]
        %v209 = vld [vmem:[%s200 + $0x8] sm:$0xff]
        %vm210 = vcmask 261120
        %v211 = vsel %vm210, %v206, -inf
        %212 = vmax.xlane.f32.xlu0 %v211
        %v213 = vpop.xlane.xlu0 %212
        %v214 = vsel %vm210, %v207, -inf
        %215 = vmax.xlane.f32.xlu0 %v214
        %v216 = vpop.xlane.xlu0 %215
        %v217 = vsub.f32 %v206, %v213
        %v218 = vsub.f32 %v207, %v216
        %v219 = vmul.f32 %v217, 1.442695
        %v220 = vpow.pop %v219
        %v221 = vmul.f32 %v218, 1.442695
        %v222 = vpow.pop %v221
        %v223 = vsel %vm210, %v220, 0.0
        %224 = vadd.xlane.f32.xlu0 %v223
        %v225 = vpop.xlane.xlu0 %224
        %v226 = vsel %vm210, %v222, 0.0
        %227 = vadd.xlane.f32.xlu0 %v226
        %v228 = vpop.xlane.xlu0 %227
        %v229 = vlog2.pop %v225
        %v230 = vmul.f32 %v229, 0.6931472
        %v231 = vlog2.pop %v228
        %v232 = vmul.f32 %v231, 0.6931472
        %v233 = vlaneseq
        %v234 = vand.u32 %v233, 127
        %235 = vset.pattern.permute.xlu0 0
        %236 = vperm.xlu0 %235, %v208
        %v237 = vpop.permute.xlu0 %236
        %238 = vset.pattern.permute.xlu0 0
        %239 = vperm.xlu0 %238, %v209
        %v240 = vpop.permute.xlu0 %239
        %vm241 = vcmp.eq.s32.totalorder %v234, %v237
        %vm242 = vcmp.eq.s32.totalorder %v234, %v240
        %v243 = vsel %vm241, 0.903125, 0.003125
        %v244 = vsel %vm242, 0.903125, 0.003125
        %v245 = vmul.f32 %v243, %v217
        %v246 = vmul.f32 %v244, %v218
        %v247 = vsel %vm210, %v245, 0.0
        %248 = vadd.xlane.f32.xlu0 %v247
        %v249 = vpop.xlane.xlu0 %248
        %v250 = vsel %vm210, %v246, 0.0
        %251 = vadd.xlane.f32.xlu0 %v250
        %v252 = vpop.xlane.xlu0 %251
        %v253 = vsub.f32 %v230, %v249
        %v254 = vsub.f32 %v232, %v252
        %s255 = smul.u32 %s16, 16
        %v256 = vlaneseq
        %v257 = vshrl.u32 %v256, 7
        %v258 = vadd.s32 %v257, 8
        %v259 = vstv %s255
        %v260 = vadd.s32 %v259, %v257
        %v261 = vadd.s32 %v259, %v258
        %vm262 = vcmp.lt.s32.totalorder %v260, 40
        %vm263 = vcmp.lt.s32.totalorder %v261, 40
        %v264 = vsel %vm262, %v253, 0.0
        %v265 = vsel %vm263, %v254, 0.0
        %vm266 = vcmask 7168
        %v267 = vsel %vm266, %v264, 0.0
        %v268 = vsel %vm266, %v265, 0.0
        %v269 = vadd.f32 %v267, %v268
        %270 = vadd.xlane.f32.xlu0 %v269
        %v271 = vpop.xlane.xlu0 %270
        %v272 = vrot.slane %v271, 4
        %v273 = vadd.f32 %v271, %v272
        %v274 = vrot.slane %v273, 2
        %v275 = vadd.f32 %v273, %v274
        %v276 = vrot.slane %v275, 1
        %v277 = vadd.f32 %v275, %v276
        %s278 = vtos %v277
        %v279 = vstv %s278
        %280 = vst [vmem:[%s177] sm:$0xff] %v279
        %s281 = sand.u32 %s76, 1
        %s282 = scalar_lea.sflag [#allocation3], %s281
        %s283 = sand.u32 %s76, 1
        %s284 = smul.addr %s283, 8
        %s285 = scalar_lea.vmem [#allocation2], %s284
        // Predicated region
        $region29: #{tpu_custom_call.1} parent=27 // pred_check
          %p286 = pneg %p86
        $region30: #{tpu_custom_call.1} parent=27 // pred_check_branch
          %288 = sbr.rel (%p286) target = $region32
        $region31: #{tpu_custom_call.1} parent=27 // pred_region
          %s290 = ssub.s32 128, 128
          %291 = vsyncadd %s282, %s290
          %s292 = smul.addr %s16, 128
          %s293 = scalar_lea.hbm %s2, %s292
          %s295 = sshll.u32 %s285, 4
          %s296 = int_to_ptr.vmem [resolvable:$true] %s295
          %298 = dma.vmem_to_hbm [thread:$0]  %s296, 128, %s293, %s282
        $region32: #{tpu_custom_call.1} parent=27 // pred_fallthru
          _
      $region28: #{tpu_custom_call.1} parent=5 // pred_fallthru
        _
      %p299 = scmp.le.s32.totalorder 2, %s11
      // Predicated region
      $region33: #{tpu_custom_call.1} parent=5 // pred_check
        %p300 = pneg %p299
      $region34: #{tpu_custom_call.1} parent=5 // pred_check_branch
        %302 = sbr.rel (%p300) target = $region36
      $region35: #{tpu_custom_call.1} parent=5 // pred_region
        %s303 = ssub.s32 %s11, 2
        // Predicated region
        $region37: #{tpu_custom_call.1} parent=35 // pred_check
          %p304 = pneg %p92
        $region38: #{tpu_custom_call.1} parent=35 // pred_check_branch
          %306 = sbr.rel (%p304) target = $region40
        $region39: #{tpu_custom_call.1} parent=35 // pred_region
          %s307 = sand.u32 %s77, 1
          %s308 = scalar_lea.sflag [#allocation3], %s307
          %s309 = sand.u32 %s77, 1
          %s310 = smul.addr %s309, 8
          %s311 = scalar_lea.vmem [#allocation2], %s310
          %312 = dma.done %s308, 128
        $region40: #{tpu_custom_call.1} parent=35 // pred_fallthru
          _
      $region36: #{tpu_custom_call.1} parent=5 // pred_fallthru
        _
    $region6: #{tpu_custom_call.1} parent=1 // loop_footer
      %s15 = sadd.s32 1, %s11
    $region7: #{tpu_custom_call.1} parent=1 // loop_footer_branch
      %10 = sbr.rel target = $region3
    $region8: #{tpu_custom_call.1} parent=1 // loop_exit
      _
    %313 = vsyncpa [#allocation3], 1
    %s314 = scalar_lea.sflag [#allocation3], 1
    %315 = vsyncpa %s314, 1

</llo_original>
